<compile_context>
chip_gen: v7x
topology: tpu7x:2x2x1
jax: 0.10.0
libtpu: 0.0.40
codegen_flags: <defaults>
</compile_context>

<pallas_src>
import jax
import jax.numpy as jnp
from jax import lax
from jax.experimental import pallas as pl
from jax.experimental.pallas import tpu as pltpu


def _round_up(x, m):
    return (x + m - 1) // m * m


# ---------------- kernel 1: tiled matmul + fused BN-statistics epilogue -----
def _matmul_stats_kernel(x_ref, w_ref, y_ref, stats_ref):
    # (TM, Cin) @ (Cin, Kp) on the MXU, f32 accumulation.
    y = jnp.dot(x_ref[...], w_ref[...], preferred_element_type=jnp.float32)
    y_ref[...] = y

    # Fused BatchNorm statistics: per-column sum and sum-of-squares accumulated
    # into a VMEM-resident output block across the ("arbitrary") row grid axis.
    @pl.when(pl.program_id(0) == 0)
    def _():
        stats_ref[...] = jnp.zeros_like(stats_ref)

    col_sum = jnp.sum(y, axis=0, keepdims=True)        # (1, Kp)
    col_sq = jnp.sum(y * y, axis=0, keepdims=True)     # (1, Kp)
    stats_ref[...] += jnp.concatenate([col_sum, col_sq], axis=0)


# ---------------- kernel 2: normalize + affine + ReLU ------------------------
def _norm_relu_kernel(y_ref, scale_ref, shift_ref, o_ref):
    # scale = gamma * rsqrt(var + eps), shift = beta - mean * scale, precomputed
    # once per call in the wrapper and kept resident (constant index_map).
    o_ref[...] = jnp.maximum(y_ref[...] * scale_ref[...] + shift_ref[...], 0.0)


def upconv_forward(x_nchw, weight, gamma, beta, *, resize, eps=1e-5,
                   tile_m=1024, mxu_dtype=jnp.float32,
                   vmem_limit_bytes=48 * 1024 * 1024):
    """Forward pass of UpConv.

    x_nchw: (N, Cin, H, W) float32
    weight: (Cin, Cout, r, r) float32   -- ConvTranspose2d weight layout
    gamma, beta: (Cout,) float32        -- BatchNorm2d affine params
    """
    N, Cin, H, W = x_nchw.shape
    Cin_w, Cout, r, r2 = weight.shape
    assert Cin_w == Cin and r == resize and r2 == resize
    Hout, Wout = H * r, W * r

    Kout = Cout * r * r
    Kp = _round_up(Kout, 128)                 # lane-dense output columns
    M = N * H * W
    tm = _round_up(min(tile_m, M), 16)        # multiple of 16 (safe for bf16 tiles)
    M_pad = _round_up(M, tm)
    n_tiles = M_pad // tm

    # NCHW -> (N*H*W, Cin); pad rows to a multiple of the tile with zeros
    # (zero rows contribute nothing to sum / sum^2 and are sliced off at the end).
    x_flat = jnp.transpose(x_nchw, (0, 2, 3, 1)).reshape(M, Cin)
    x_flat = jnp.pad(x_flat, ((0, M_pad - M), (0, 0))).astype(mxu_dtype)

    # (Cin, Cout, r, r) -> (Cin, Cout*r*r), zero-pad columns up to Kp
    w_flat = jnp.pad(weight.reshape(Cin, Kout), ((0, 0), (0, Kp - Kout)))
    w_flat = w_flat.astype(mxu_dtype)

    cparams_acc = pltpu.CompilerParams(
        dimension_semantics=("arbitrary",),   # stats accumulate across row tiles
        vmem_limit_bytes=vmem_limit_bytes)
    cparams_par = pltpu.CompilerParams(
        dimension_semantics=("parallel",),    # megacore-friendly on v7x
        vmem_limit_bytes=vmem_limit_bytes)

    # ---- conv-transpose matmul + fused BN statistics ----
    y_pad, stats = pl.pallas_call(
        _matmul_stats_kernel,
        out_shape=(jax.ShapeDtypeStruct((M_pad, Kp), jnp.float32),
                   jax.ShapeDtypeStruct((2, Kp), jnp.float32)),
        grid=(n_tiles,),
        in_specs=[
            pl.BlockSpec((tm, Cin), lambda i: (i, 0)),
            pl.BlockSpec((Cin, Kp), lambda i: (0, 0)),    # weight resident in VMEM
        ],
        out_specs=(
            pl.BlockSpec((tm, Kp), lambda i: (i, 0)),
            pl.BlockSpec((2, Kp), lambda i: (0, 0)),      # resident accumulator
        ),
        compiler_params=cparams_acc,
    )(x_flat, w_flat)

    # ---- finish BatchNorm stats on the tiny per-column sums (plain XLA) ----
    # Per-channel stats over (N, Hout, Wout) == reduce over rows and over the
    # r*r columns belonging to each output channel.
    # TODO(synk): for extremely large N*Hout*Wout consider a Welford/Chan merge
    # instead of E[y^2]-mean^2 for better numerical robustness.
    count = float(M * r * r)                              # = N*Hout*Wout
    sum_c = stats[0, :Kout].reshape(Cout, r * r).sum(axis=1)
    sq_c = stats[1, :Kout].reshape(Cout, r * r).sum(axis=1)
    mean_c = sum_c / count
    var_c = sq_c / count - mean_c * mean_c                # biased (training-mode)
    inv_c = lax.rsqrt(var_c + eps)
    scale_c = gamma.astype(jnp.float32) * inv_c
    shift_c = beta.astype(jnp.float32) - mean_c * scale_c

    # expand per-channel -> per-column row vectors, zero-padded to Kp columns
    scale_row = jnp.zeros((1, Kp), jnp.float32).at[0, :Kout].set(
        jnp.repeat(scale_c, r * r))
    shift_row = jnp.zeros((1, Kp), jnp.float32).at[0, :Kout].set(
        jnp.repeat(shift_c, r * r))

    # ---- normalize + affine + ReLU on the pre-shuffle layout ----
    out2d = pl.pallas_call(
        _norm_relu_kernel,
        out_shape=jax.ShapeDtypeStruct((M_pad, Kp), jnp.float32),
        grid=(n_tiles,),
        in_specs=[
            pl.BlockSpec((tm, Kp), lambda i: (i, 0)),
            pl.BlockSpec((1, Kp), lambda i: (0, 0)),      # resident scale
            pl.BlockSpec((1, Kp), lambda i: (0, 0)),      # resident shift
        ],
        out_specs=pl.BlockSpec((tm, Kp), lambda i: (i, 0)),
        compiler_params=cparams_par,
    )(y_pad, scale_row, shift_row)

    # single pixel-shuffle + NCHW transpose at the very end
    out = out2d[:M, :Kout].reshape(N, H, W, Cout, r, r)
    out = jnp.transpose(out, (0, 3, 1, 4, 2, 5)).reshape(N, Cout, Hout, Wout)
    return out


def _reference_upconv(x, weight, gamma, beta, resize, eps=1e-5):
    """Pure-JAX reference for a correctness check."""
    N, Cin, H, W = x.shape
    _, Cout, r, _ = weight.shape
    y = jnp.einsum("nchw,cokl->nohkwl", x, weight)
    y = y.reshape(N, Cout, H * r, W * r)
    mean = jnp.mean(y, axis=(0, 2, 3), keepdims=True)
    var = jnp.mean((y - mean) ** 2, axis=(0, 2, 3), keepdims=True)  # biased
    y = gamma.reshape(1, Cout, 1, 1) * (y - mean) * lax.rsqrt(var + eps) \
        + beta.reshape(1, Cout, 1, 1)
    return jnp.maximum(y, 0.0)


if __name__ == "__main__":
    # small shapes consistent with the module
    N, Cin, H, W = 2, 4, 16, 16
    Cout, resize = 6, 2

    key = jax.random.PRNGKey(0)
    kx, kw, kg, kb = jax.random.split(key, 4)

    x = jax.random.normal(kx, (N, Cin, H, W), dtype=jnp.float32)
    # ConvTranspose2d weight: (in_channels, out_channels, kH, kW)
    weight = 0.1 * jax.random.normal(kw, (Cin, Cout, resize, resize), dtype=jnp.float32)
    gamma = 1.0 + 0.1 * jax.random.normal(kg, (Cout,), dtype=jnp.float32)
    beta = 0.1 * jax.random.normal(kb, (Cout,), dtype=jnp.float32)

    ref = _reference_upconv(x, weight, gamma, beta, resize)

    # f32 path; small tile so the multi-step row grid + resident stats
    # accumulator is actually exercised (M=512 -> 4 grid steps).
    out = upconv_forward(x, weight, gamma, beta, resize=resize, tile_m=128)
    out = jax.block_until_ready(out)
    assert out.shape == (N, Cout, H * resize, W * resize), out.shape
    assert jnp.allclose(out, ref, atol=1e-4, rtol=1e-4), \
        float(jnp.max(jnp.abs(out - ref)))

    # bf16 MXU-input path (recommended for v6e/v7x); looser tolerance.
    out_bf16 = upconv_forward(x, weight, gamma, beta, resize=resize,
                              tile_m=128, mxu_dtype=jnp.bfloat16)
    out_bf16 = jax.block_until_ready(out_bf16)
    assert jnp.allclose(out_bf16, ref, atol=5e-2, rtol=5e-2), \
        float(jnp.max(jnp.abs(out_bf16 - ref)))

    print("KERNEL_OK")
</pallas_src>

<mosaic_0001>
module attributes {stable_mosaic.version = 11 : i64} {
  func.func @_matmul_stats_kernel(%arg0: i32, %arg1: memref<128x4xf32, #tpu.memory_space<vmem>>, %arg2: memref<4x128xf32, #tpu.memory_space<vmem>>, %arg3: memref<128x128xf32, #tpu.memory_space<vmem>>, %arg4: memref<2x128xf32, #tpu.memory_space<vmem>>) attributes {dimension_semantics = [#tpu.dimension_semantics<arbitrary>], iteration_bounds = array<i64: 4>, scalar_prefetch = 0 : i64, scratch_operands = 0 : i64, tpu.core_type = #tpu.core_type<tc>, window_params = [{transform_indices = @transform_0, window_bounds = array<i64: 128, 4>}, {pipeline_mode = #tpu.pipeline_mode<synchronous>, transform_indices = @transform_1, window_bounds = array<i64: 4, 128>}, {transform_indices = @transform_2, window_bounds = array<i64: 128, 128>}, {pipeline_mode = #tpu.pipeline_mode<synchronous>, transform_indices = @transform_3, window_bounds = array<i64: 2, 128>}]} {
    %c0 = arith.constant 0 : index
    %c0_0 = arith.constant 0 : index
    %0 = vector.load %arg1[%c0, %c0_0] : memref<128x4xf32, #tpu.memory_space<vmem>>, vector<128x4xf32>
    %c0_1 = arith.constant 0 : index
    %c0_2 = arith.constant 0 : index
    %1 = vector.load %arg2[%c0_1, %c0_2] : memref<4x128xf32, #tpu.memory_space<vmem>>, vector<4x128xf32>
    %cst = arith.constant dense<0.000000e+00> : vector<128x128xf32>
    %2 = tpu.matmul %0, %1, %cst {dimension_numbers = #tpu.dot_dimension_numbers<[1], [0], [0], [1], [0, 0, 1, 1], [], []>} : vector<128x4xf32>, vector<4x128xf32>, vector<128x128xf32> -> vector<128x128xf32>
    %c0_3 = arith.constant 0 : index
    %c0_4 = arith.constant 0 : index
    %3 = vector.load %arg3[%c0_3, %c0_4] : memref<128x128xf32, #tpu.memory_space<vmem>>, vector<128x128xf32>
    tpu.vector_store %arg3[%c0_3, %c0_4], %2 {strides = array<i32>} : memref<128x128xf32, #tpu.memory_space<vmem>>, vector<128x128xf32>,
    %c0_i32 = arith.constant 0 : i32
    %4 = arith.cmpi eq, %arg0, %c0_i32 : i32
    %5 = arith.extui %4 : i1 to i32
    %c0_i32_5 = arith.constant 0 : i32
    %6 = arith.cmpi ne, %5, %c0_i32_5 : i32
    scf.if %6 {
      %cst_12 = arith.constant 0.000000e+00 : f32
      %16 = vector.broadcast %cst_12 : f32 to vector<2x128xf32>
      %c0_13 = arith.constant 0 : index
      %c0_14 = arith.constant 0 : index
      %17 = vector.load %arg4[%c0_13, %c0_14] : memref<2x128xf32, #tpu.memory_space<vmem>>, vector<2x128xf32>
      tpu.vector_store %arg4[%c0_13, %c0_14], %16 {strides = array<i32>} : memref<2x128xf32, #tpu.memory_space<vmem>>, vector<2x128xf32>,
    } else {
    }
    %cst_6 = arith.constant dense<0.000000e+00> : vector<128xf32>
    %7 = vector.multi_reduction <add>, %2, %cst_6 [0] : vector<128x128xf32> to vector<128xf32>
    %8 = vector.shape_cast %7 : vector<128xf32> to vector<1x128xf32>
    %9 = arith.mulf %2, %2 : vector<128x128xf32>
    %cst_7 = arith.constant dense<0.000000e+00> : vector<128xf32>
    %10 = vector.multi_reduction <add>, %9, %cst_7 [0] : vector<128x128xf32> to vector<128xf32>
    %11 = vector.shape_cast %10 : vector<128xf32> to vector<1x128xf32>
    %c0_8 = arith.constant 0 : index
    %c0_9 = arith.constant 0 : index
    %12 = vector.load %arg4[%c0_8, %c0_9] : memref<2x128xf32, #tpu.memory_space<vmem>>, vector<2x128xf32>
    %13 = tpu.concatenate %8, %11 in 0 : vector<1x128xf32>, vector<1x128xf32> -> vector<2x128xf32>
    %14 = arith.addf %12, %13 : vector<2x128xf32>
    %c0_10 = arith.constant 0 : index
    %c0_11 = arith.constant 0 : index
    %15 = vector.load %arg4[%c0_10, %c0_11] : memref<2x128xf32, #tpu.memory_space<vmem>>, vector<2x128xf32>
    tpu.vector_store %arg4[%c0_10, %c0_11], %14 {strides = array<i32>} : memref<2x128xf32, #tpu.memory_space<vmem>>, vector<2x128xf32>,
    return
  }
  func.func @transform_0(%arg0: i32) -> (i32, i32) {
    %c0_i32 = arith.constant 0 : i32
    %c0_i32_0 = arith.constant 0 : i32
    return %arg0, %c0_i32 : i32, i32
  }
  func.func @transform_1(%arg0: i32) -> (i32, i32) {
    %c0_i32 = arith.constant 0 : i32
    %c0_i32_0 = arith.constant 0 : i32
    %c0_i32_1 = arith.constant 0 : i32
    return %c0_i32, %c0_i32_0 : i32, i32
  }
  func.func @transform_2(%arg0: i32) -> (i32, i32) {
    %c0_i32 = arith.constant 0 : i32
    %c0_i32_0 = arith.constant 0 : i32
    return %arg0, %c0_i32 : i32, i32
  }
  func.func @transform_3(%arg0: i32) -> (i32, i32) {
    %c0_i32 = arith.constant 0 : i32
    %c0_i32_0 = arith.constant 0 : i32
    %c0_i32_1 = arith.constant 0 : i32
    return %c0_i32, %c0_i32_0 : i32, i32
  }
}

</mosaic_0001>

<llo_original>
// kernel: tpu_custom_call.1
$region0: #{tpu_custom_call.1}
  #allocation0 [shape = 'u32[]', space=smem, size = 0x4, offset = 0x4, fixed_abs, tag = 'smem constant byte address 0x4 - core index']
  #allocation1 [shape = 'u32[144,128]{1,0:T(1,128)}', space=vmem, size = 0x12000, scoped, tag = 'internal scratch']
  %s0 = inlined_call_operand.vmem [shape: f32[512,4], index: 0, kind: input, shape index: {}]
  %s1 = inlined_call_operand.vmem [shape: f32[4,128], index: 1, kind: input, shape index: {}]
  %s2 = inlined_call_operand.hbm [shape: f32[512,128], index: 2, kind: output, shape index: {0}]
  %s3 = inlined_call_operand.hbm [shape: f32[2,128], index: 3, kind: output, shape index: {1}]
  %4 = xla_tuple %s2, %s3
  %s5 = sld [smem:[#allocation0]]
  $region53: #{tpu_custom_call.1} parent=0
    _
  %s7 = ssub.s32 1, %s5
  %s8 = scalar_select 0, %s7, %s5
  $region1: #{tpu_custom_call.1} parent=0
    #allocation2 [shape = 'u8[131072]{0}', space=vmem, size = 0x20000, scoped, tag = 'output window, operand 0']
    #allocation3 [shape = 's32[2]{0}', space=sflag, size = 0x8, scoped, tag = 'scoped memory for tpu_custom_call.1']
    #allocation4 [shape = 'u8[1024]{0}', space=vmem, size = 0x400, scoped, tag = 'output window, operand 1, single buffered']
    #allocation5 [shape = 's32[1]{0}', space=sflag, size = 0x4, scoped, tag = 'scoped memory for tpu_custom_call.1']
    %9 = vsyncpa [#allocation3], 0
    %s10 = scalar_lea.sflag [#allocation3], 1
    %11 = vsyncpa %s10, 0
    %12 = vsyncpa [#allocation5], 0
    loop: start=0, step=1, limit=6
    $region2: #{tpu_custom_call.1} parent=1 // loop_pre_header
      _
    $region3: #{tpu_custom_call.1} parent=1 // loop_header
      %s14 = sphi 0, %s18
      %p15 = scmp.ge.s32.totalorder %s14, 6
      %s24 = sphi 0, %s26
      %s27 = sphi 0, %s24
      %s28 = sphi 0, %s27
      %s44 = sphi 0, %s28
      %s48 = sphi 0, %s48
      %s50 = sphi 0, %s48
      %s51 = sphi 0, %s50
      %s65 = sphi 0, %s51
      %s71 = sphi 0, %s73
      %s74 = sphi 0, %s71
      %s75 = sphi 0, %s74
      %s91 = sphi 0, %s75
      %s95 = sphi 0, %s95
      %s97 = sphi 0, %s95
      %s98 = sphi 0, %s97
      %s112 = sphi 0, %s98
    $region4: #{tpu_custom_call.1} parent=1 // loop_header_branch
      %17 = sbr.rel (%p15) target = $region8
    $region5: #{tpu_custom_call.1} parent=1 // loop_body
      %s19 = ssub.s32 %s14, 1
      %s20 = ssub.s32 %s14, 2
      %s21 = sadd.s32 %s14, 1
      %s22 = ssub.s32 %s14, %s21
      %p23 = scmp.eq.s32.totalorder %s22, 0
      %s25 = sadd.s32 %s24, 1
      %s26 = scalar_select %p23, %s24, %s25
      %p29 = pneg %p23
      %p30 = scmp.eq.s32.totalorder %s14, 3
      %p31 = por %p29, %p30
      %p32 = scmp.ne.s32.totalorder %s24, %s27
      %p33 = scmp.eq.s32.totalorder %s14, 0
      %p34 = por %p32, %p33
      %p35 = scmp.ne.s32.totalorder %s24, %s27
      %p36 = scmp.eq.s32.totalorder %s19, 3
      %p37 = por %p35, %p36
      %p38 = scmp.ne.s32.totalorder %s27, %s28
      %p39 = scmp.eq.s32.totalorder %s19, 0
      %p40 = por %p38, %p39
      %p41 = scmp.ne.s32.totalorder %s27, %s28
      %p42 = scmp.eq.s32.totalorder %s20, 3
      %p43 = por %p41, %p42
      %p45 = scmp.ne.s32.totalorder %s28, %s44
      %p46 = scmp.eq.s32.totalorder %s20, 0
      %p47 = por %p45, %p46
      %s49 = sadd.s32 %s48, 1
      %p52 = scmp.eq.s32.totalorder %s14, 3
      %p53 = scmp.ne.s32.totalorder %s48, %s50
      %p54 = scmp.eq.s32.totalorder %s14, 0
      %p55 = por %p53, %p54
      %p56 = scmp.ne.s32.totalorder %s48, %s50
      %p57 = scmp.eq.s32.totalorder %s19, 3
      %p58 = por %p56, %p57
      %p59 = scmp.ne.s32.totalorder %s50, %s51
      %p60 = scmp.eq.s32.totalorder %s19, 0
      %p61 = por %p59, %p60
      %p62 = scmp.ne.s32.totalorder %s50, %s51
      %p63 = scmp.eq.s32.totalorder %s20, 3
      %p64 = por %p62, %p63
      %p66 = scmp.ne.s32.totalorder %s51, %s65
      %p67 = scmp.eq.s32.totalorder %s20, 0
      %p68 = por %p66, %p67
      %s69 = ssub.s32 %s14, %s21
      %p70 = scmp.eq.s32.totalorder %s69, 0
      %s72 = sadd.s32 %s71, 1
      %s73 = scalar_select %p70, %s71, %s72
      %p76 = pneg %p70
      %p77 = scmp.eq.s32.totalorder %s14, 3
      %p78 = por %p76, %p77
      %p79 = scmp.ne.s32.totalorder %s71, %s74
      %p80 = scmp.eq.s32.totalorder %s14, 0
      %p81 = por %p79, %p80
      %p82 = scmp.ne.s32.totalorder %s71, %s74
      %p83 = scmp.eq.s32.totalorder %s19, 3
      %p84 = por %p82, %p83
      %p85 = scmp.ne.s32.totalorder %s74, %s75
      %p86 = scmp.eq.s32.totalorder %s19, 0
      %p87 = por %p85, %p86
      %p88 = scmp.ne.s32.totalorder %s74, %s75
      %p89 = scmp.eq.s32.totalorder %s20, 3
      %p90 = por %p88, %p89
      %p92 = scmp.ne.s32.totalorder %s75, %s91
      %p93 = scmp.eq.s32.totalorder %s20, 0
      %p94 = por %p92, %p93
      %s96 = sadd.s32 %s95, 1
      %p99 = scmp.eq.s32.totalorder %s14, 3
      %p100 = scmp.ne.s32.totalorder %s95, %s97
      %p101 = scmp.eq.s32.totalorder %s14, 0
      %p102 = por %p100, %p101
      %p103 = scmp.ne.s32.totalorder %s95, %s97
      %p104 = scmp.eq.s32.totalorder %s19, 3
      %p105 = por %p103, %p104
      %p106 = scmp.ne.s32.totalorder %s97, %s98
      %p107 = scmp.eq.s32.totalorder %s19, 0
      %p108 = por %p106, %p107
      %p109 = scmp.ne.s32.totalorder %s97, %s98
      %p110 = scmp.eq.s32.totalorder %s20, 3
      %p111 = por %p109, %p110
      %p113 = scmp.ne.s32.totalorder %s98, %s112
      %p114 = scmp.eq.s32.totalorder %s20, 0
      %p115 = por %p113, %p114
      %p116 = scmp.le.s32.totalorder 1, %s14
      %p117 = scmp.lt.s32.totalorder %s14, 5
      %p118 = pnand %p116, %p117
      %p119 = pneg %p118
      // Predicated region
      $region9: #{tpu_custom_call.1} parent=5 // pred_check
        _
      $region10: #{tpu_custom_call.1} parent=5 // pred_check_branch
        %121 = sbr.rel (%p118) target = $region12
      $region11: #{tpu_custom_call.1} parent=5 // pred_region
        %s122 = ssub.s32 %s14, 1
        // Predicated region
        $region13: #{tpu_custom_call.1} parent=11 // pred_check
          %p123 = pneg %p61
        $region14: #{tpu_custom_call.1} parent=11 // pred_check_branch
          %125 = sbr.rel (%p123) target = $region16
        $region15: #{tpu_custom_call.1} parent=11 // pred_region
          _
        $region16: #{tpu_custom_call.1} parent=11 // pred_fallthru
          _
      $region12: #{tpu_custom_call.1} parent=5 // pred_fallthru
        _
      %p126 = scmp.lt.s32.totalorder %s14, 4
      // Predicated region
      $region17: #{tpu_custom_call.1} parent=5 // pred_check
        %p127 = pneg %p126
      $region18: #{tpu_custom_call.1} parent=5 // pred_check_branch
        %129 = sbr.rel (%p127) target = $region20
      $region19: #{tpu_custom_call.1} parent=5 // pred_region
        // Predicated region
        $region21: #{tpu_custom_call.1} parent=19 // pred_check
          %p130 = pneg %p34
        $region22: #{tpu_custom_call.1} parent=19 // pred_check_branch
          %132 = sbr.rel (%p130) target = $region24
        $region23: #{tpu_custom_call.1} parent=19 // pred_region
          %s133 = smul.u32 16, %s14
          %p134 = scmp.lt.s32.totalorder %s133, 63
          %s135 = scalar_select %p134, %s133, 63
          %s136 = smul.addr %s135, 8
          %s137 = scalar_lea.vmem %s0, %s136
          %s138 = smul.u32 16, %s14
        $region24: #{tpu_custom_call.1} parent=19 // pred_fallthru
          _
      $region20: #{tpu_custom_call.1} parent=5 // pred_fallthru
        _
      %p139 = scmp.le.s32.totalorder 1, %s14
      %p140 = scmp.lt.s32.totalorder %s14, 5
      %p141 = pnand %p139, %p140
      %p142 = pneg %p141
      // Predicated region
      $region25: #{tpu_custom_call.1} parent=5 // pred_check
        _
      $region26: #{tpu_custom_call.1} parent=5 // pred_check_branch
        %144 = sbr.rel (%p141) target = $region28
      $region27: #{tpu_custom_call.1} parent=5 // pred_region
        %s145 = ssub.s32 %s14, 1
        %s146 = smul.u32 16, %s19
        %p147 = scmp.lt.s32.totalorder %s146, 63
        %s148 = scalar_select %p147, %s146, 63
        %s149 = smul.addr %s148, 8
        %s150 = scalar_lea.vmem %s0, %s149
        %p151 = pneg %p40
        %p152 = pneg %p37
        %p153 = pneg %p61
        %p154 = pneg %p58
        %p155 = pneg %p87
        %p156 = pneg %p84
        %s157 = sand.u32 %s74, 1
        %s158 = scalar_lea.sflag [#allocation3], %s157
        %s159 = sand.u32 %s74, 1
        %s160 = smul.addr %s159, 128
        %s161 = scalar_lea.vmem [#allocation2], %s160
        %p162 = pneg %p108
        %p163 = pneg %p105
        %s164 = smul.u32 16, %s19
        %p165 = scmp.lt.s32.totalorder %s164, 63
        %s166 = scalar_select %p165, %s164, 63
        %s167 = smul.addr %s166, 8
        %s168 = scalar_lea.vmem %s0, %s167
        %s169 = smul.u32 16, %s19
        %s170 = smul.u32 16, %s19
        %v171 = vld [vmem:[%s168] sm:$0xff]
        %v172 = vld [vmem:[%s168 + $0x8] sm:$0xff]
        %v173 = vld [vmem:[%s168 + $0x10] sm:$0xff]
        %v174 = vld [vmem:[%s168 + $0x18] sm:$0xff]
        %v175 = vld [vmem:[%s168 + $0x20] sm:$0xff]
        %v176 = vld [vmem:[%s168 + $0x28] sm:$0xff]
        %v177 = vld [vmem:[%s168 + $0x30] sm:$0xff]
        %v178 = vld [vmem:[%s168 + $0x38] sm:$0xff]
        %v179 = vld [vmem:[%s168 + $0x40] sm:$0xff]
        %v180 = vld [vmem:[%s168 + $0x48] sm:$0xff]
        %v181 = vld [vmem:[%s168 + $0x50] sm:$0xff]
        %v182 = vld [vmem:[%s168 + $0x58] sm:$0xff]
        %v183 = vld [vmem:[%s168 + $0x60] sm:$0xff]
        %v184 = vld [vmem:[%s168 + $0x68] sm:$0xff]
        %v185 = vld [vmem:[%s168 + $0x70] sm:$0xff]
        %v186 = vld [vmem:[%s168 + $0x78] sm:$0xff]
        %v187 = vld [vmem:[%s1] sm:$0xf]
        %vm188 = vcmask 31744
        %v190 = vsel %vm188, %v171, 0
        %v193 = vsel %vm188, %v172, 0
        %v196 = vsel %vm188, %v173, 0
        %v199 = vsel %vm188, %v174, 0
        %v202 = vsel %vm188, %v175, 0
        %v205 = vsel %vm188, %v176, 0
        %v208 = vsel %vm188, %v177, 0
        %v211 = vsel %vm188, %v178, 0
        %v214 = vsel %vm188, %v179, 0
        %v217 = vsel %vm188, %v180, 0
        %v220 = vsel %vm188, %v181, 0
        %v223 = vsel %vm188, %v182, 0
        %v226 = vsel %vm188, %v183, 0
        %v229 = vsel %vm188, %v184, 0
        %v232 = vsel %vm188, %v185, 0
        %v235 = vsel %vm188, %v186, 0
        %vm237 = vcmask 1043456
        %v239 = vsel %vm237, %v187, 0
        %241 = vmatprep.subr.mxu0 0.0
        %242 = vmatpush1.msra.mxu0 %v239
        %243 = vmatprep.subr.mxu0 0.0
        %244 = vmatpush1.msra.mxu0 0.0
        %245 = vmatprep.subr.mxu0 0.0
        %246 = vmatpush1.msra.mxu0 0.0
        %247 = vmatprep.subr.mxu0 0.0
        %248 = vmatpush1.msra.mxu0 0.0
        %249 = vmatprep.subr.mxu0 0.0
        %250 = vmatpush1.msra.mxu0 0.0
        %251 = vmatprep.subr.mxu0 0.0
        %252 = vmatpush1.msra.mxu0 0.0
        %253 = vmatprep.subr.mxu0 0.0
        %254 = vmatpush1.msra.mxu0 0.0
        %255 = vmatprep.subr.mxu0 0.0
        %256 = vmatpush1.msra.mxu0 0.0
        %257 = vmatprep.subr.mxu0 0.0
        %258 = vmatpush1.msra.mxu0 0.0
        %259 = vmatprep.subr.mxu0 0.0
        %260 = vmatpush1.msra.mxu0 0.0
        %261 = vmatprep.subr.mxu0 0.0
        %262 = vmatpush1.msra.mxu0 0.0
        %263 = vmatprep.subr.mxu0 0.0
        %264 = vmatpush1.msra.mxu0 0.0
        %265 = vmatprep.subr.mxu0 0.0
        %266 = vmatpush1.msra.mxu0 0.0
        %267 = vmatprep.subr.mxu0 0.0
        %268 = vmatpush1.msra.mxu0 0.0
        %269 = vmatprep.subr.mxu0 0.0
        %270 = vmatpush1.msra.mxu0 0.0
        %271 = vmatprep.subr.mxu0 0.0
        %272 = vmatpush1.msra.mxu0 0.0
        %273 = vmatprep.subr.mxu0 0.0
        %274 = vmatpush1.msra.mxu0 0.0
        %275 = vmatprep.subr.mxu0 0.0
        %276 = vmatpush1.msra.mxu0 0.0
        %277 = vmatprep.subr.mxu0 0.0
        %278 = vmatpush1.msra.mxu0 0.0
        %279 = vmatprep.subr.mxu0 0.0
        %280 = vmatpush1.msra.mxu0 0.0
        %281 = vmatprep.subr.mxu0 0.0
        %282 = vmatpush1.msra.mxu0 0.0
        %283 = vmatprep.subr.mxu0 0.0
        %284 = vmatpush1.msra.mxu0 0.0
        %285 = vmatprep.subr.mxu0 0.0
        %286 = vmatpush1.msra.mxu0 0.0
        %287 = vmatprep.subr.mxu0 0.0
        %288 = vmatpush1.msra.mxu0 0.0
        %289 = vmatprep.subr.mxu0 0.0
        %290 = vmatpush1.msra.mxu0 0.0
        %291 = vmatprep.subr.mxu0 0.0
        %292 = vmatpush1.msra.mxu0 0.0
        %293 = vmatprep.subr.mxu0 0.0
        %294 = vmatpush1.msra.mxu0 0.0
        %295 = vmatprep.subr.mxu0 0.0
        %296 = vmatpush1.msra.mxu0 0.0
        %297 = vmatprep.subr.mxu0 0.0
        %298 = vmatpush1.msra.mxu0 0.0
        %299 = vmatprep.subr.mxu0 0.0
        %300 = vmatpush1.msra.mxu0 0.0
        %301 = vmatprep.subr.mxu0 0.0
        %302 = vmatpush1.msra.mxu0 0.0
        %303 = vmatprep.subr.mxu0 0.0
        %304 = vmatpush1.msra.mxu0 0.0
        %305 = vmatprep.mubr.f32.mxu0 0.0
        %306 = vmatmul.mubr.f32.gmra.mrb[0].mxu0 %v190
        %v307 = vpop.f32.mrb[0].mxu0
        %v308 = vadd.f32 0.0, %v307
        %v309 = vpop.f32.mrb[0].mxu0
        %310 = vmatprep.mubr.f32.mxu0 0.0
        %311 = vmatmul.mubr.f32.gmra.mrb[0].mxu0 %v193
        %v312 = vpop.f32.mrb[0].mxu0
        %v313 = vadd.f32 0.0, %v312
        %v314 = vpop.f32.mrb[0].mxu0
        %315 = vmatprep.mubr.f32.mxu0 0.0
        %316 = vmatmul.mubr.f32.gmra.mrb[0].mxu0 %v196
        %v317 = vpop.f32.mrb[0].mxu0
        %v318 = vadd.f32 0.0, %v317
        %v319 = vpop.f32.mrb[0].mxu0
        %320 = vmatprep.mubr.f32.mxu0 0.0
        %321 = vmatmul.mubr.f32.gmra.mrb[0].mxu0 %v199
        %v322 = vpop.f32.mrb[0].mxu0
        %v323 = vadd.f32 0.0, %v322
        %v324 = vpop.f32.mrb[0].mxu0
        %325 = vmatprep.mubr.f32.mxu0 0.0
        %326 = vmatmul.mubr.f32.gmra.mrb[0].mxu0 %v202
        %v327 = vpop.f32.mrb[0].mxu0
        %v328 = vadd.f32 0.0, %v327
        %v329 = vpop.f32.mrb[0].mxu0
        %330 = vmatprep.mubr.f32.mxu0 0.0
        %331 = vmatmul.mubr.f32.gmra.mrb[0].mxu0 %v205
        %v332 = vpop.f32.mrb[0].mxu0
        %v333 = vadd.f32 0.0, %v332
        %v334 = vpop.f32.mrb[0].mxu0
        %335 = vmatprep.mubr.f32.mxu0 0.0
        %336 = vmatmul.mubr.f32.gmra.mrb[0].mxu0 %v208
        %v337 = vpop.f32.mrb[0].mxu0
        %v338 = vadd.f32 0.0, %v337
        %v339 = vpop.f32.mrb[0].mxu0
        %340 = vmatprep.mubr.f32.mxu0 0.0
        %341 = vmatmul.mubr.f32.gmra.mrb[0].mxu0 %v211
        %v342 = vpop.f32.mrb[0].mxu0
        %v343 = vadd.f32 0.0, %v342
        %v344 = vpop.f32.mrb[0].mxu0
        %345 = vmatprep.mubr.f32.mxu0 0.0
        %346 = vmatmul.mubr.f32.gmra.mrb[0].mxu0 %v214
        %v347 = vpop.f32.mrb[0].mxu0
        %v348 = vadd.f32 0.0, %v347
        %v349 = vpop.f32.mrb[0].mxu0
        %350 = vmatprep.mubr.f32.mxu0 0.0
        %351 = vmatmul.mubr.f32.gmra.mrb[0].mxu0 %v217
        %v352 = vpop.f32.mrb[0].mxu0
        %v353 = vadd.f32 0.0, %v352
        %v354 = vpop.f32.mrb[0].mxu0
        %355 = vmatprep.mubr.f32.mxu0 0.0
        %356 = vmatmul.mubr.f32.gmra.mrb[0].mxu0 %v220
        %v357 = vpop.f32.mrb[0].mxu0
        %v358 = vadd.f32 0.0, %v357
        %v359 = vpop.f32.mrb[0].mxu0
        %360 = vmatprep.mubr.f32.mxu0 0.0
        %361 = vmatmul.mubr.f32.gmra.mrb[0].mxu0 %v223
        %v362 = vpop.f32.mrb[0].mxu0
        %v363 = vadd.f32 0.0, %v362
        %v364 = vpop.f32.mrb[0].mxu0
        %365 = vmatprep.mubr.f32.mxu0 0.0
        %366 = vmatmul.mubr.f32.gmra.mrb[0].mxu0 %v226
        %v367 = vpop.f32.mrb[0].mxu0
        %v368 = vadd.f32 0.0, %v367
        %v369 = vpop.f32.mrb[0].mxu0
        %370 = vmatprep.mubr.f32.mxu0 0.0
        %371 = vmatmul.mubr.f32.gmra.mrb[0].mxu0 %v229
        %v372 = vpop.f32.mrb[0].mxu0
        %v373 = vadd.f32 0.0, %v372
        %v374 = vpop.f32.mrb[0].mxu0
        %375 = vmatprep.mubr.f32.mxu0 0.0
        %376 = vmatmul.mubr.f32.gmra.mrb[0].mxu0 %v232
        %v377 = vpop.f32.mrb[0].mxu0
        %v378 = vadd.f32 0.0, %v377
        %v379 = vpop.f32.mrb[0].mxu0
        %380 = vmatprep.mubr.f32.mxu0 0.0
        %381 = vmatmul.mubr.f32.gmra.mrb[0].mxu0 %v235
        %v382 = vpop.f32.mrb[0].mxu0
        %v383 = vadd.f32 0.0, %v382
        %v384 = vpop.f32.mrb[0].mxu0
        %385 = vdwg.mxu0
        %386 = vst [vmem:[%s161] sm:$0xff] %v308
        %387 = vst [vmem:[%s161 + $0x8] sm:$0xff] %v313
        %388 = vst [vmem:[%s161 + $0x10] sm:$0xff] %v318
        %389 = vst [vmem:[%s161 + $0x18] sm:$0xff] %v323
        %390 = vst [vmem:[%s161 + $0x20] sm:$0xff] %v328
        %391 = vst [vmem:[%s161 + $0x28] sm:$0xff] %v333
        %392 = vst [vmem:[%s161 + $0x30] sm:$0xff] %v338
        %393 = vst [vmem:[%s161 + $0x38] sm:$0xff] %v343
        %394 = vst [vmem:[%s161 + $0x40] sm:$0xff] %v348
        %395 = vst [vmem:[%s161 + $0x48] sm:$0xff] %v353
        %396 = vst [vmem:[%s161 + $0x50] sm:$0xff] %v358
        %397 = vst [vmem:[%s161 + $0x58] sm:$0xff] %v363
        %398 = vst [vmem:[%s161 + $0x60] sm:$0xff] %v368
        %399 = vst [vmem:[%s161 + $0x68] sm:$0xff] %v373
        %400 = vst [vmem:[%s161 + $0x70] sm:$0xff] %v378
        %401 = vst [vmem:[%s161 + $0x78] sm:$0xff] %v383
        %p402 = scmp.eq.s32.totalorder %s19, 0
        // Predicated region
        $region29: #{tpu_custom_call.1} parent=27 // pred_check
          %p403 = pneg %p402
        $region30: #{tpu_custom_call.1} parent=27 // pred_check_branch
          %405 = sbr.rel (%p403) target = $region32
        $region31: #{tpu_custom_call.1} parent=27 // pred_region
          %406 = vst [vmem:[#allocation4] sm:$0x3] 0.0
        $region32: #{tpu_custom_call.1} parent=27 // pred_fallthru
          _
        %v407 = vadd.f32 %v308, %v313
        %v408 = vadd.f32 %v407, %v318
        %v409 = vadd.f32 %v408, %v323
        %v410 = vadd.f32 %v409, %v328
        %v411 = vadd.f32 %v410, %v333
        %v412 = vadd.f32 %v411, %v338
        %v413 = vadd.f32 %v412, %v343
        %v414 = vadd.f32 %v413, %v348
        %v415 = vadd.f32 %v414, %v353
        %v416 = vadd.f32 %v415, %v358
        %v417 = vadd.f32 %v416, %v363
        %v418 = vadd.f32 %v417, %v368
        %v419 = vadd.f32 %v418, %v373
        %v420 = vadd.f32 %v419, %v378
        %v421 = vadd.f32 %v420, %v383
        %v422 = vrot.slane %v421, 4
        %v423 = vadd.f32 %v421, %v422
        %v424 = vrot.slane %v423, 2
        %v425 = vadd.f32 %v423, %v424
        %v426 = vrot.slane %v425, 1
        %v427 = vadd.f32 %v425, %v426
        %v428 = vmul.f32 %v308, %v308
        %v429 = vmul.f32 %v313, %v313
        %v430 = vmul.f32 %v318, %v318
        %v431 = vmul.f32 %v323, %v323
        %v432 = vmul.f32 %v328, %v328
        %v433 = vmul.f32 %v333, %v333
        %v434 = vmul.f32 %v338, %v338
        %v435 = vmul.f32 %v343, %v343
        %v436 = vmul.f32 %v348, %v348
        %v437 = vmul.f32 %v353, %v353
        %v438 = vmul.f32 %v358, %v358
        %v439 = vmul.f32 %v363, %v363
        %v440 = vmul.f32 %v368, %v368
        %v441 = vmul.f32 %v373, %v373
        %v442 = vmul.f32 %v378, %v378
        %v443 = vmul.f32 %v383, %v383
        %v444 = vadd.f32 %v428, %v429
        %v445 = vadd.f32 %v444, %v430
        %v446 = vadd.f32 %v445, %v431
        %v447 = vadd.f32 %v446, %v432
        %v448 = vadd.f32 %v447, %v433
        %v449 = vadd.f32 %v448, %v434
        %v450 = vadd.f32 %v449, %v435
        %v451 = vadd.f32 %v450, %v436
        %v452 = vadd.f32 %v451, %v437
        %v453 = vadd.f32 %v452, %v438
        %v454 = vadd.f32 %v453, %v439
        %v455 = vadd.f32 %v454, %v440
        %v456 = vadd.f32 %v455, %v441
        %v457 = vadd.f32 %v456, %v442
        %v458 = vadd.f32 %v457, %v443
        %v459 = vrot.slane %v458, 4
        %v460 = vadd.f32 %v458, %v459
        %v461 = vrot.slane %v460, 2
        %v462 = vadd.f32 %v460, %v461
        %v463 = vrot.slane %v462, 1
        %v464 = vadd.f32 %v462, %v463
        %v465 = vld [vmem:[#allocation4] sm:$0x3]
        %vm466 = vcmask 1040384
        %v467 = vsel %vm466, %v427, %v464
        %v468 = vadd.f32 %v465, %v467
        %469 = vst [vmem:[#allocation4] sm:$0x3] %v468
        %s470 = sand.u32 %s74, 1
        %s471 = scalar_lea.sflag [#allocation3], %s470
        %s472 = sand.u32 %s74, 1
        %s473 = smul.addr %s472, 128
        %s474 = scalar_lea.vmem [#allocation2], %s473
        // Predicated region
        $region33: #{tpu_custom_call.1} parent=27 // pred_check
          %p475 = pneg %p84
        $region34: #{tpu_custom_call.1} parent=27 // pred_check_branch
          %477 = sbr.rel (%p475) target = $region36
        $region35: #{tpu_custom_call.1} parent=27 // pred_region
          %s478 = smul.u32 16, %s19
          %s480 = ssub.s32 2048, 2048
          %481 = vsyncadd %s471, %s480
          %s482 = smul.addr %s478, 128
          %s483 = scalar_lea.hbm %s2, %s482
          %s484 = sshll.u32 %s474, 4
          %s485 = int_to_ptr.vmem [resolvable:$true] %s484
          %490 = dma.vmem_to_hbm [thread:$0]  %s485, 2048, %s483, %s471, 128, 128, 8
        $region36: #{tpu_custom_call.1} parent=27 // pred_fallthru
          _
        // Predicated region
        $region37: #{tpu_custom_call.1} parent=27 // pred_check
          %p491 = pneg %p105
        $region38: #{tpu_custom_call.1} parent=27 // pred_check_branch
          %493 = sbr.rel (%p491) target = $region40
        $region39: #{tpu_custom_call.1} parent=27 // pred_region
          %s495 = ssub.s32 32, 32
          %496 = vsyncadd [#allocation5], %s495
          %s498 = sshll.u32 [#allocation4], 4
          %s499 = int_to_ptr.vmem [resolvable:$true] %s498
          %501 = dma.vmem_to_hbm [thread:$0]  %s499, 32, %s3, [#allocation5]
        $region40: #{tpu_custom_call.1} parent=27 // pred_fallthru
          _
        // Predicated region
        $region41: #{tpu_custom_call.1} parent=27 // pred_check
          %p502 = pneg %p105
        $region42: #{tpu_custom_call.1} parent=27 // pred_check_branch
          %504 = sbr.rel (%p502) target = $region44
        $region43: #{tpu_custom_call.1} parent=27 // pred_region
          %505 = dma.done [#allocation5], 32
        $region44: #{tpu_custom_call.1} parent=27 // pred_fallthru
          _
      $region28: #{tpu_custom_call.1} parent=5 // pred_fallthru
        _
      %p506 = scmp.le.s32.totalorder 2, %s14
      // Predicated region
      $region45: #{tpu_custom_call.1} parent=5 // pred_check
        %p507 = pneg %p506
      $region46: #{tpu_custom_call.1} parent=5 // pred_check_branch
        %509 = sbr.rel (%p507) target = $region48
      $region47: #{tpu_custom_call.1} parent=5 // pred_region
        %s510 = ssub.s32 %s14, 2
        // Predicated region
        $region49: #{tpu_custom_call.1} parent=47 // pred_check
          %p511 = pneg %p90
        $region50: #{tpu_custom_call.1} parent=47 // pred_check_branch
          %513 = sbr.rel (%p511) target = $region52
        $region51: #{tpu_custom_call.1} parent=47 // pred_region
          %s514 = sand.u32 %s75, 1
          %s515 = scalar_lea.sflag [#allocation3], %s514
          %s516 = sand.u32 %s75, 1
          %s517 = smul.addr %s516, 128
          %s518 = scalar_lea.vmem [#allocation2], %s517
          %519 = dma.done %s515, 2048
        $region52: #{tpu_custom_call.1} parent=47 // pred_fallthru
          _
      $region48: #{tpu_custom_call.1} parent=5 // pred_fallthru
        _
    $region6: #{tpu_custom_call.1} parent=1 // loop_footer
      %s18 = sadd.s32 1, %s14
    $region7: #{tpu_custom_call.1} parent=1 // loop_footer_branch
      %13 = sbr.rel target = $region3
    $region8: #{tpu_custom_call.1} parent=1 // loop_exit
      _
    %520 = vsyncpa [#allocation3], 1
    %s521 = scalar_lea.sflag [#allocation3], 1
    %522 = vsyncpa %s521, 1
    %523 = vsyncpa [#allocation5], 1

</llo_original>
